<compile_context>
chip_gen: v5e
topology: v5e:2x2
jax: 0.10.0
libtpu: 0.0.40
codegen_flags: <defaults>
</compile_context>

<pallas_src>
import functools

import jax
import jax.numpy as jnp
from jax.experimental import pallas as pl
from jax.experimental.pallas import tpu as pltpu

_LN_EPS = 1e-5
_LANE = 128


def _round_up(x, m):
    return ((x + m - 1) // m) * m


def _ln_relu(h, gamma, beta, true_d):
    """Fused LayerNorm + ReLU.

    One-pass moments: s and ss are independent XLU reductions issued
    back-to-back; rsqrt goes to the EUP.  Divide by the TRUE feature count
    (lane axis may be zero-padded to 128).  Affine+ReLU is folded to
    max(h*a + c, 0) with a = gamma*inv_std, c = beta - mu*a.
    """
    inv_d = 1.0 / true_d
    s = jnp.sum(h, axis=-1, keepdims=True)
    ss = jnp.sum(h * h, axis=-1, keepdims=True)
    mu = s * inv_d
    var = ss * inv_d - mu * mu              # biased variance, like nn.LayerNorm
    inv = jax.lax.rsqrt(var + _LN_EPS)      # (tile_b, 1) per-row scalar, EUP
    a = gamma * inv                         # gamma*inv_std
    c = beta - mu * a
    return jnp.maximum(h * a + c, 0.0)


def actor_fwd_kernel(
    x_ref,
    w1_ref, p1_ref,          # w1 bf16 (in, p1);  p1 f32 (8, p1): rows b1/g1/be1
    w2_ref, p2_ref,          # w2 bf16 (p1, p2);  p2 f32 (8, p2): rows b2/g2/be2
    wmu_ref, pmu_ref,        # w_mu bf16 (p2, pa); pmu f32 (8, pa): row 0 = b_mu
    o_ref,
    *, d1, d2,
):
    x = x_ref[...]                           # f32 activations throughout
    p1 = p1_ref[...]
    p2 = p2_ref[...]

    # fc1 -> layernorm -> relu   (bf16 MXU operands, f32 accumulate)
    h = jnp.dot(x.astype(jnp.bfloat16), w1_ref[...],
                preferred_element_type=jnp.float32) + p1[0:1]
    h = _ln_relu(h, p1[1:2], p1[2:3], d1)

    # fc2 -> layernorm -> relu
    h = jnp.dot(h.astype(jnp.bfloat16), w2_ref[...],
                preferred_element_type=jnp.float32) + p2[0:1]
    h = _ln_relu(h, p2[1:2], p2[2:3], d2)

    # mu -> tanh
    a = jnp.dot(h.astype(jnp.bfloat16), wmu_ref[...],
                preferred_element_type=jnp.float32) + pmu_ref[0:1]
    out_w = o_ref.shape[1]                   # lane-dense (pa) or narrow (n_actions)
    o_ref[...] = jnp.tanh(a)[:, :out_w].astype(o_ref.dtype)


@functools.partial(jax.jit, static_argnames=("dims",))
def actor_forward(state, pp, *, dims):
    """state: (B, input_dims) float32. pp: packed/padded params. dims: true dims."""
    input_dims, fc1_dims, fc2_dims, n_actions = dims
    B = state.shape[0]
    p1 = pp["w1"].shape[1]
    p2 = pp["w2"].shape[1]
    pa = pp["w_mu"].shape[1]

    # Batch tiling: multiple of 8 sublanes.  For B >= 16, always produce >= 2
    # grid points (v7x has 2 TensorCores); cap at 512 rows so single-TC
    # v5e/v6e amortize per-grid-step overhead with big tiles.
    if B < 16:
        tile_b = _round_up(max(B, 1), 8)
    else:
        tile_b = min(512, _round_up((B + 1) // 2, 8))
    b_pad = _round_up(B, tile_b)
    if b_pad != B:
        state = jnp.pad(state, ((0, b_pad - B), (0, 0)))
    nb = b_pad // tile_b

    # Output width: lane-dense (padded to 128) for small/latency batches,
    # narrow (== n_actions, legal since block dim == full array dim) for large
    # batches to avoid 32x padded HBM writeback + wrapper column slice.
    out_cols = pa if b_pad <= 256 else n_actions

    def bcast(arr):  # weights/param slabs: same full block for every batch tile
        return pl.BlockSpec(arr.shape, lambda i: (0,) * arr.ndim)

    args = (state, pp["w1"], pp["p1"], pp["w2"], pp["p2"], pp["w_mu"], pp["pmu"])

    flops = 2 * b_pad * (input_dims * p1 + p1 * p2 + p2 * pa)
    transcendentals = b_pad * (2 + pa)            # 2 rsqrt per row + tanh lanes
    bytes_accessed = (sum(int(a.size) * a.dtype.itemsize for a in args)
                      + b_pad * out_cols * 4)

    # Explicit scoped-VMEM budget: double-buffered blocks + slack, floored at
    # 32 MiB, capped at 64 MiB (v7x physical VMEM).
    blk_bytes = sum(int(a.size) * a.dtype.itemsize for a in args[1:])
    blk_bytes += tile_b * input_dims * 4 + tile_b * out_cols * 4
    vmem_limit = min(max(2 * blk_bytes + (4 << 20), 32 << 20), 64 << 20)

    out = pl.pallas_call(
        functools.partial(actor_fwd_kernel, d1=float(fc1_dims), d2=float(fc2_dims)),
        out_shape=jax.ShapeDtypeStruct((b_pad, out_cols), jnp.float32),
        grid=(nb,),
        in_specs=[pl.BlockSpec((tile_b, input_dims), lambda i: (i, 0))]
                 + [bcast(a) for a in args[1:]],
        out_specs=pl.BlockSpec((tile_b, out_cols), lambda i: (i, 0)),
        compiler_params=pltpu.CompilerParams(
            dimension_semantics=("parallel",),
            vmem_limit_bytes=int(vmem_limit),
        ),
        cost_estimate=pl.CostEstimate(
            flops=int(flops),
            transcendentals=int(transcendentals),
            bytes_accessed=int(bytes_accessed),
        ),
    )(*args)

    if out_cols == n_actions and b_pad == B:
        return out
    return out[:B, :n_actions]


def init_params(key, input_dims, fc1_dims, fc2_dims, n_actions):
    """Deterministic init matching ActorNetwork._init_weights shapes/bounds.

    Weights are stored transposed: (in_features, out_features). Unpadded, f32.
    """
    ks = jax.random.split(key, 6)
    # PyTorch: f1 = 1/sqrt(fc1.weight.size()[0]) = 1/sqrt(fc1_dims), etc.
    f1 = 1.0 / jnp.sqrt(jnp.float32(fc1_dims))
    f2 = 1.0 / jnp.sqrt(jnp.float32(fc2_dims))
    f3 = 0.003
    u = lambda k, shape, b: jax.random.uniform(k, shape, jnp.float32, -b, b)
    return {
        "w1": u(ks[0], (input_dims, fc1_dims), f1),
        "b1": u(ks[1], (1, fc1_dims), f1),
        "ln1_g": jnp.ones((1, fc1_dims), jnp.float32),
        "ln1_b": jnp.zeros((1, fc1_dims), jnp.float32),
        "w2": u(ks[2], (fc1_dims, fc2_dims), f2),
        "b2": u(ks[3], (1, fc2_dims), f2),
        "ln2_g": jnp.ones((1, fc2_dims), jnp.float32),
        "ln2_b": jnp.zeros((1, fc2_dims), jnp.float32),
        "w_mu": u(ks[4], (fc2_dims, n_actions), f3),
        "b_mu": u(ks[5], (1, n_actions), f3),
    }


def prepare_params(params, input_dims, fc1_dims, fc2_dims, n_actions):
    """One-time param prep: zero-pad lane dims to multiples of 128, cast the
    matmul weights to bf16, and pack each layer's (bias, gamma, beta) rows into
    a single 8-sublane (8, p) f32 slab.

    Padded gamma/beta/bias lanes are zero, so padded activation lanes stay
    exactly zero through every layer; correctness is preserved because
    LayerNorm divides by the true feature count inside the kernel.
    """
    p1 = _round_up(fc1_dims, _LANE)
    p2 = _round_up(fc2_dims, _LANE)
    pa = _round_up(n_actions, _LANE)

    def pad2(a, rows, cols):
        return jnp.pad(a, ((0, rows - a.shape[0]), (0, cols - a.shape[1])))

    def slab(rows, cols):
        s = jnp.concatenate(
            [jnp.pad(r, ((0, 0), (0, cols - r.shape[1]))) for r in rows], axis=0)
        return jnp.pad(s, ((0, 8 - s.shape[0]), (0, 0)))   # f32, 8-sublane aligned

    return {
        "w1": pad2(params["w1"], input_dims, p1).astype(jnp.bfloat16),
        "p1": slab([params["b1"], params["ln1_g"], params["ln1_b"]], p1),
        "w2": pad2(params["w2"], p1, p2).astype(jnp.bfloat16),
        "p2": slab([params["b2"], params["ln2_g"], params["ln2_b"]], p2),
        "w_mu": pad2(params["w_mu"], p2, pa).astype(jnp.bfloat16),
        "pmu": slab([params["b_mu"]], pa),
    }


def actor_forward_ref(state, params):
    """Pure-JAX f32 reference (unpadded params) for correctness checking."""
    def ln(h, g, b):
        mu = jnp.mean(h, axis=-1, keepdims=True)
        var = jnp.mean((h - mu) ** 2, axis=-1, keepdims=True)
        return (h - mu) / jnp.sqrt(var + _LN_EPS) * g + b

    h = state @ params["w1"] + params["b1"]
    h = jnp.maximum(ln(h, params["ln1_g"], params["ln1_b"]), 0.0)
    h = h @ params["w2"] + params["b2"]
    h = jnp.maximum(ln(h, params["ln2_g"], params["ln2_b"]), 0.0)
    return jnp.tanh(h @ params["w_mu"] + params["b_mu"])


if __name__ == "__main__":
    key = jax.random.PRNGKey(0)
    k_param, k1, k2, k3 = jax.random.split(key, 4)

    input_dims, fc1_dims, fc2_dims, n_actions = 16, 32, 32, 4
    dims = (input_dims, fc1_dims, fc2_dims, n_actions)

    params = init_params(k_param, *dims)      # unpadded (PyTorch-equivalent)
    pp = prepare_params(params, *dims)        # padded / packed / bf16, done once

    # B=8:  single grid point, lane-dense output (latency mode).
    # B=20: ragged batch -> padding + 2 grid tiles, lane-dense output.
    # B=300: multi-tile batch -> narrow (n_actions-wide) output path.
    # bf16 MXU operands => compare against the f32 reference at ~1e-2.
    for B, k in ((8, k1), (20, k2), (300, k3)):
        state = jax.random.normal(k, (B, input_dims), jnp.float32)
        out = jax.block_until_ready(actor_forward(state, pp, dims=dims))
        ref = actor_forward_ref(state, params)
        assert out.shape == (B, n_actions)
        assert jnp.allclose(out, ref, atol=1e-2, rtol=1e-2), \
            f"mismatch vs reference (B={B})"

    print("KERNEL_OK")
</pallas_src>

<mosaic_0001>
module attributes {stable_mosaic.version = 11 : i64} {
  func.func @actor_fwd_kernel(%arg0: i32, %arg1: memref<8x16xf32, #tpu.memory_space<vmem>>, %arg2: memref<16x128xbf16, #tpu.memory_space<vmem>>, %arg3: memref<8x128xf32, #tpu.memory_space<vmem>>, %arg4: memref<128x128xbf16, #tpu.memory_space<vmem>>, %arg5: memref<8x128xf32, #tpu.memory_space<vmem>>, %arg6: memref<128x128xbf16, #tpu.memory_space<vmem>>, %arg7: memref<8x128xf32, #tpu.memory_space<vmem>>, %arg8: memref<8x128xf32, #tpu.memory_space<vmem>>) attributes {dimension_semantics = [#tpu.dimension_semantics<parallel>], iteration_bounds = array<i64: 1>, scalar_prefetch = 0 : i64, scratch_operands = 0 : i64, tpu.core_type = #tpu.core_type<tc>, window_params = [{transform_indices = @transform_0, window_bounds = array<i64: 8, 16>}, {pipeline_mode = #tpu.pipeline_mode<synchronous>, transform_indices = @transform_1, window_bounds = array<i64: 16, 128>}, {pipeline_mode = #tpu.pipeline_mode<synchronous>, transform_indices = @transform_2, window_bounds = array<i64: 8, 128>}, {pipeline_mode = #tpu.pipeline_mode<synchronous>, transform_indices = @transform_3, window_bounds = array<i64: 128, 128>}, {pipeline_mode = #tpu.pipeline_mode<synchronous>, transform_indices = @transform_4, window_bounds = array<i64: 8, 128>}, {pipeline_mode = #tpu.pipeline_mode<synchronous>, transform_indices = @transform_5, window_bounds = array<i64: 128, 128>}, {pipeline_mode = #tpu.pipeline_mode<synchronous>, transform_indices = @transform_6, window_bounds = array<i64: 8, 128>}, {transform_indices = @transform_7, window_bounds = array<i64: 8, 128>}]} {
    %c0 = arith.constant 0 : index
    %c0_0 = arith.constant 0 : index
    %0 = vector.load %arg1[%c0, %c0_0] : memref<8x16xf32, #tpu.memory_space<vmem>>, vector<8x16xf32>
    %c0_1 = arith.constant 0 : index
    %c0_2 = arith.constant 0 : index
    %1 = vector.load %arg3[%c0_1, %c0_2] : memref<8x128xf32, #tpu.memory_space<vmem>>, vector<8x128xf32>
    %c0_3 = arith.constant 0 : index
    %c0_4 = arith.constant 0 : index
    %2 = vector.load %arg5[%c0_3, %c0_4] : memref<8x128xf32, #tpu.memory_space<vmem>>, vector<8x128xf32>
    %3 = arith.truncf %0 : vector<8x16xf32> to vector<8x16xbf16>
    %c0_5 = arith.constant 0 : index
    %c0_6 = arith.constant 0 : index
    %4 = vector.load %arg2[%c0_5, %c0_6] : memref<16x128xbf16, #tpu.memory_space<vmem>>, vector<16x128xbf16>
    %cst = arith.constant dense<0.000000e+00> : vector<8x128xf32>
    %5 = tpu.matmul %3, %4, %cst {dimension_numbers = #tpu.dot_dimension_numbers<[1], [0], [0], [1], [0, 0, 1, 1], [], []>} : vector<8x16xbf16>, vector<16x128xbf16>, vector<8x128xf32> -> vector<8x128xf32>
    %6 = vector.extract_strided_slice %1 {offsets = [0, 0], sizes = [1, 128], strides = [1, 1]} : vector<8x128xf32> to vector<1x128xf32>
    %7 = vector.broadcast %6 : vector<1x128xf32> to vector<8x128xf32>
    %8 = arith.addf %5, %7 : vector<8x128xf32>
    %9 = vector.extract_strided_slice %1 {offsets = [1, 0], sizes = [1, 128], strides = [1, 1]} : vector<8x128xf32> to vector<1x128xf32>
    %10 = vector.extract_strided_slice %1 {offsets = [2, 0], sizes = [1, 128], strides = [1, 1]} : vector<8x128xf32> to vector<1x128xf32>
    %cst_7 = arith.constant dense<0.000000e+00> : vector<8xf32>
    %11 = vector.multi_reduction <add>, %8, %cst_7 [1] : vector<8x128xf32> to vector<8xf32>
    %12 = vector.shape_cast %11 : vector<8xf32> to vector<8x1xf32>
    %13 = arith.mulf %8, %8 : vector<8x128xf32>
    %cst_8 = arith.constant dense<0.000000e+00> : vector<8xf32>
    %14 = vector.multi_reduction <add>, %13, %cst_8 [1] : vector<8x128xf32> to vector<8xf32>
    %15 = vector.shape_cast %14 : vector<8xf32> to vector<8x1xf32>
    %cst_9 = arith.constant 3.125000e-02 : f32
    %16 = vector.broadcast %cst_9 : f32 to vector<8x1xf32>
    %17 = arith.mulf %12, %16 : vector<8x1xf32>
    %cst_10 = arith.constant 3.125000e-02 : f32
    %18 = vector.broadcast %cst_10 : f32 to vector<8x1xf32>
    %19 = arith.mulf %15, %18 : vector<8x1xf32>
    %20 = arith.mulf %17, %17 : vector<8x1xf32>
    %21 = arith.subf %19, %20 : vector<8x1xf32>
    %cst_11 = arith.constant 9.99999974E-6 : f32
    %22 = vector.broadcast %cst_11 : f32 to vector<8x1xf32>
    %23 = arith.addf %21, %22 : vector<8x1xf32>
    %24 = math.rsqrt %23 : vector<8x1xf32>
    %25 = vector.broadcast %9 : vector<1x128xf32> to vector<8x128xf32>
    %26 = vector.broadcast %24 : vector<8x1xf32> to vector<8x128xf32>
    %27 = arith.mulf %25, %26 : vector<8x128xf32>
    %28 = vector.broadcast %17 : vector<8x1xf32> to vector<8x128xf32>
    %29 = arith.mulf %28, %27 : vector<8x128xf32>
    %30 = vector.broadcast %10 : vector<1x128xf32> to vector<8x128xf32>
    %31 = arith.subf %30, %29 : vector<8x128xf32>
    %32 = arith.mulf %8, %27 : vector<8x128xf32>
    %33 = arith.addf %32, %31 : vector<8x128xf32>
    %cst_12 = arith.constant 0.000000e+00 : f32
    %34 = vector.broadcast %cst_12 : f32 to vector<8x128xf32>
    %35 = arith.maximumf %33, %34 : vector<8x128xf32>
    %36 = arith.truncf %35 : vector<8x128xf32> to vector<8x128xbf16>
    %c0_13 = arith.constant 0 : index
    %c0_14 = arith.constant 0 : index
    %37 = vector.load %arg4[%c0_13, %c0_14] : memref<128x128xbf16, #tpu.memory_space<vmem>>, vector<128x128xbf16>
    %cst_15 = arith.constant dense<0.000000e+00> : vector<8x128xf32>
    %38 = tpu.matmul %36, %37, %cst_15 {dimension_numbers = #tpu.dot_dimension_numbers<[1], [0], [0], [1], [0, 0, 1, 1], [], []>} : vector<8x128xbf16>, vector<128x128xbf16>, vector<8x128xf32> -> vector<8x128xf32>
    %39 = vector.extract_strided_slice %2 {offsets = [0, 0], sizes = [1, 128], strides = [1, 1]} : vector<8x128xf32> to vector<1x128xf32>
    %40 = vector.broadcast %39 : vector<1x128xf32> to vector<8x128xf32>
    %41 = arith.addf %38, %40 : vector<8x128xf32>
    %42 = vector.extract_strided_slice %2 {offsets = [1, 0], sizes = [1, 128], strides = [1, 1]} : vector<8x128xf32> to vector<1x128xf32>
    %43 = vector.extract_strided_slice %2 {offsets = [2, 0], sizes = [1, 128], strides = [1, 1]} : vector<8x128xf32> to vector<1x128xf32>
    %cst_16 = arith.constant dense<0.000000e+00> : vector<8xf32>
    %44 = vector.multi_reduction <add>, %41, %cst_16 [1] : vector<8x128xf32> to vector<8xf32>
    %45 = vector.shape_cast %44 : vector<8xf32> to vector<8x1xf32>
    %46 = arith.mulf %41, %41 : vector<8x128xf32>
    %cst_17 = arith.constant dense<0.000000e+00> : vector<8xf32>
    %47 = vector.multi_reduction <add>, %46, %cst_17 [1] : vector<8x128xf32> to vector<8xf32>
    %48 = vector.shape_cast %47 : vector<8xf32> to vector<8x1xf32>
    %cst_18 = arith.constant 3.125000e-02 : f32
    %49 = vector.broadcast %cst_18 : f32 to vector<8x1xf32>
    %50 = arith.mulf %45, %49 : vector<8x1xf32>
    %cst_19 = arith.constant 3.125000e-02 : f32
    %51 = vector.broadcast %cst_19 : f32 to vector<8x1xf32>
    %52 = arith.mulf %48, %51 : vector<8x1xf32>
    %53 = arith.mulf %50, %50 : vector<8x1xf32>
    %54 = arith.subf %52, %53 : vector<8x1xf32>
    %cst_20 = arith.constant 9.99999974E-6 : f32
    %55 = vector.broadcast %cst_20 : f32 to vector<8x1xf32>
    %56 = arith.addf %54, %55 : vector<8x1xf32>
    %57 = math.rsqrt %56 : vector<8x1xf32>
    %58 = vector.broadcast %42 : vector<1x128xf32> to vector<8x128xf32>
    %59 = vector.broadcast %57 : vector<8x1xf32> to vector<8x128xf32>
    %60 = arith.mulf %58, %59 : vector<8x128xf32>
    %61 = vector.broadcast %50 : vector<8x1xf32> to vector<8x128xf32>
    %62 = arith.mulf %61, %60 : vector<8x128xf32>
    %63 = vector.broadcast %43 : vector<1x128xf32> to vector<8x128xf32>
    %64 = arith.subf %63, %62 : vector<8x128xf32>
    %65 = arith.mulf %41, %60 : vector<8x128xf32>
    %66 = arith.addf %65, %64 : vector<8x128xf32>
    %cst_21 = arith.constant 0.000000e+00 : f32
    %67 = vector.broadcast %cst_21 : f32 to vector<8x128xf32>
    %68 = arith.maximumf %66, %67 : vector<8x128xf32>
    %69 = arith.truncf %68 : vector<8x128xf32> to vector<8x128xbf16>
    %c0_22 = arith.constant 0 : index
    %c0_23 = arith.constant 0 : index
    %70 = vector.load %arg6[%c0_22, %c0_23] : memref<128x128xbf16, #tpu.memory_space<vmem>>, vector<128x128xbf16>
    %cst_24 = arith.constant dense<0.000000e+00> : vector<8x128xf32>
    %71 = tpu.matmul %69, %70, %cst_24 {dimension_numbers = #tpu.dot_dimension_numbers<[1], [0], [0], [1], [0, 0, 1, 1], [], []>} : vector<8x128xbf16>, vector<128x128xbf16>, vector<8x128xf32> -> vector<8x128xf32>
    %c0_25 = arith.constant 0 : index
    %c0_26 = arith.constant 0 : index
    %72 = vector.load %arg7[%c0_25, %c0_26] : memref<8x128xf32, #tpu.memory_space<vmem>>, vector<1x128xf32>
    %73 = vector.broadcast %72 : vector<1x128xf32> to vector<8x128xf32>
    %74 = arith.addf %71, %73 : vector<8x128xf32>
    %75 = math.tanh %74 : vector<8x128xf32>
    %c0_27 = arith.constant 0 : index
    %c0_28 = arith.constant 0 : index
    %76 = vector.load %arg8[%c0_27, %c0_28] : memref<8x128xf32, #tpu.memory_space<vmem>>, vector<8x128xf32>
    tpu.vector_store %arg8[%c0_27, %c0_28], %75 {strides = array<i32>} : memref<8x128xf32, #tpu.memory_space<vmem>>, vector<8x128xf32>,
    return
  }
  func.func @transform_0(%arg0: i32) -> (i32, i32) {
    %c0_i32 = arith.constant 0 : i32
    %c0_i32_0 = arith.constant 0 : i32
    return %arg0, %c0_i32 : i32, i32
  }
  func.func @transform_1(%arg0: i32) -> (i32, i32) {
    %c0_i32 = arith.constant 0 : i32
    %c0_i32_0 = arith.constant 0 : i32
    %c0_i32_1 = arith.constant 0 : i32
    return %c0_i32, %c0_i32_0 : i32, i32
  }
  func.func @transform_2(%arg0: i32) -> (i32, i32) {
    %c0_i32 = arith.constant 0 : i32
    %c0_i32_0 = arith.constant 0 : i32
    %c0_i32_1 = arith.constant 0 : i32
    return %c0_i32, %c0_i32_0 : i32, i32
  }
  func.func @transform_3(%arg0: i32) -> (i32, i32) {
    %c0_i32 = arith.constant 0 : i32
    %c0_i32_0 = arith.constant 0 : i32
    %c0_i32_1 = arith.constant 0 : i32
    return %c0_i32, %c0_i32_0 : i32, i32
  }
  func.func @transform_4(%arg0: i32) -> (i32, i32) {
    %c0_i32 = arith.constant 0 : i32
    %c0_i32_0 = arith.constant 0 : i32
    %c0_i32_1 = arith.constant 0 : i32
    return %c0_i32, %c0_i32_0 : i32, i32
  }
  func.func @transform_5(%arg0: i32) -> (i32, i32) {
    %c0_i32 = arith.constant 0 : i32
    %c0_i32_0 = arith.constant 0 : i32
    %c0_i32_1 = arith.constant 0 : i32
    return %c0_i32, %c0_i32_0 : i32, i32
  }
  func.func @transform_6(%arg0: i32) -> (i32, i32) {
    %c0_i32 = arith.constant 0 : i32
    %c0_i32_0 = arith.constant 0 : i32
    %c0_i32_1 = arith.constant 0 : i32
    return %c0_i32, %c0_i32_0 : i32, i32
  }
  func.func @transform_7(%arg0: i32) -> (i32, i32) {
    %c0_i32 = arith.constant 0 : i32
    %c0_i32_0 = arith.constant 0 : i32
    return %arg0, %c0_i32 : i32, i32
  }
}

</mosaic_0001>

<llo_original>
// kernel: actor_forward.1
$region0: #{actor_forward.1}
  #allocation0 [shape = 'u32[]', space=smem, size = 0x4, offset = 0x4, fixed_abs, tag = 'smem constant byte address 0x4 - core index']
  #allocation1 [shape = 'u32[72,128]{1,0:T(1,128)}', space=vmem, size = 0x9000, scoped, tag = 'internal scratch']
  %s0 = inlined_call_operand.hbm [shape: f32[8,16], index: 0, kind: input, shape index: {}]
  %s1 = inlined_call_operand.hbm [shape: bf16[16,128], index: 1, kind: input, shape index: {}]
  %s2 = inlined_call_operand.hbm [shape: f32[8,128], index: 2, kind: input, shape index: {}]
  %s3 = inlined_call_operand.hbm [shape: bf16[128,128], index: 3, kind: input, shape index: {}]
  %s4 = inlined_call_operand.hbm [shape: f32[8,128], index: 4, kind: input, shape index: {}]
  %s5 = inlined_call_operand.hbm [shape: bf16[128,128], index: 5, kind: input, shape index: {}]
  %s6 = inlined_call_operand.hbm [shape: f32[8,128], index: 6, kind: input, shape index: {}]
  %s7 = inlined_call_operand.vmem [shape: f32[8,128], index: 7, kind: output, shape index: {}]
  %s8 = sld [smem:[#allocation0]]
  $region66: #{actor_forward.1} parent=0
    _
  %s10 = ssub.s32 1, %s8
  %s11 = scalar_select 0, %s10, %s8
  $region1: #{actor_forward.1} parent=0
    #allocation2 [shape = 'u8[4096]{0}', space=vmem, size = 0x1000, scoped, tag = 'input window, operand 0, single buffered']
    #allocation3 [shape = 's32[1]{0}', space=sflag, size = 0x4, scoped, tag = 'scoped memory for actor_forward.1']
    #allocation4 [shape = 'u8[4096]{0}', space=vmem, size = 0x1000, scoped, tag = 'input window, operand 1, single buffered']
    #allocation5 [shape = 's32[1]{0}', space=sflag, size = 0x4, scoped, tag = 'scoped memory for actor_forward.1']
    #allocation6 [shape = 'u8[4096]{0}', space=vmem, size = 0x1000, scoped, tag = 'input window, operand 2, single buffered']
    #allocation7 [shape = 'u8[32768]{0}', space=vmem, size = 0x8000, scoped, tag = 'input window, operand 3, single buffered']
    #allocation8 [shape = 's32[1]{0}', space=sflag, size = 0x4, scoped, tag = 'scoped memory for actor_forward.1']
    #allocation9 [shape = 'u8[4096]{0}', space=vmem, size = 0x1000, scoped, tag = 'input window, operand 4, single buffered']
    #allocation10 [shape = 'u8[32768]{0}', space=vmem, size = 0x8000, scoped, tag = 'input window, operand 5, single buffered']
    #allocation11 [shape = 's32[1]{0}', space=sflag, size = 0x4, scoped, tag = 'scoped memory for actor_forward.1']
    #allocation12 [shape = 'u8[4096]{0}', space=vmem, size = 0x1000, scoped, tag = 'input window, operand 6, single buffered']
    %12 = vsyncpa [#allocation3], 0
    %13 = vsyncpa [#allocation5], 0
    %14 = vsyncpa [#allocation8], 0
    %15 = vsyncpa [#allocation11], 0
    // Predicated region
    $region2: #{actor_forward.1} parent=1 // pred_check
      _
    $region3: #{actor_forward.1} parent=1 // pred_check_branch
      %17 = sbr.rel (0) target = $region5
    $region4: #{actor_forward.1} parent=1 // pred_region
      %19 = vsyncadd [#allocation3], 0
      %s21 = sshll.u32 %s0, 4
      %s22 = int_to_ptr.hbm [resolvable:$true] %s21
      %s23 = sshll.u32 [#allocation2], 4
      %s24 = int_to_ptr.vmem [resolvable:$true] %s23
      %26 = dma.hbm_to_vmem [thread:$0]  %s22, 128, %s24, [#allocation3]
    $region5: #{actor_forward.1} parent=1 // pred_fallthru
      _
    // Predicated region
    $region6: #{actor_forward.1} parent=1 // pred_check
      _
    $region7: #{actor_forward.1} parent=1 // pred_check_branch
      %28 = sbr.rel (0) target = $region9
    $region8: #{actor_forward.1} parent=1 // pred_region
      %30 = vsyncadd [#allocation5], 0
      %s31 = sshll.u32 %s1, 4
      %s32 = int_to_ptr.hbm [resolvable:$true] %s31
      %s33 = sshll.u32 [#allocation4], 4
      %s34 = int_to_ptr.vmem [resolvable:$true] %s33
      %39 = dma.hbm_to_vmem [thread:$0]  %s32, 128, %s34, [#allocation5], 64, 64, 4
    $region9: #{actor_forward.1} parent=1 // pred_fallthru
      _
    // Predicated region
    $region10: #{actor_forward.1} parent=1 // pred_check
      _
    $region11: #{actor_forward.1} parent=1 // pred_check_branch
      %41 = sbr.rel (0) target = $region13
    $region12: #{actor_forward.1} parent=1 // pred_region
      %43 = vsyncadd [#allocation5], 0
      %s45 = sshll.u32 %s2, 4
      %s46 = int_to_ptr.hbm [resolvable:$true] %s45
      %s47 = sshll.u32 [#allocation6], 4
      %s48 = int_to_ptr.vmem [resolvable:$true] %s47
      %50 = dma.hbm_to_vmem [thread:$0]  %s46, 128, %s48, [#allocation5]
    $region13: #{actor_forward.1} parent=1 // pred_fallthru
      _
    // Predicated region
    $region14: #{actor_forward.1} parent=1 // pred_check
      _
    $region15: #{actor_forward.1} parent=1 // pred_check_branch
      %52 = sbr.rel (0) target = $region17
    $region16: #{actor_forward.1} parent=1 // pred_region
      %54 = vsyncadd [#allocation8], 0
      %s55 = sshll.u32 %s3, 4
      %s56 = int_to_ptr.hbm [resolvable:$true] %s55
      %s57 = sshll.u32 [#allocation7], 4
      %s58 = int_to_ptr.vmem [resolvable:$true] %s57
      %63 = dma.hbm_to_vmem [thread:$0]  %s56, 1024, %s58, [#allocation8], 64, 64, 4
    $region17: #{actor_forward.1} parent=1 // pred_fallthru
      _
    // Predicated region
    $region18: #{actor_forward.1} parent=1 // pred_check
      _
    $region19: #{actor_forward.1} parent=1 // pred_check_branch
      %65 = sbr.rel (0) target = $region21
    $region20: #{actor_forward.1} parent=1 // pred_region
      %67 = vsyncadd [#allocation8], 0
      %s69 = sshll.u32 %s4, 4
      %s70 = int_to_ptr.hbm [resolvable:$true] %s69
      %s71 = sshll.u32 [#allocation9], 4
      %s72 = int_to_ptr.vmem [resolvable:$true] %s71
      %74 = dma.hbm_to_vmem [thread:$0]  %s70, 128, %s72, [#allocation8]
    $region21: #{actor_forward.1} parent=1 // pred_fallthru
      _
    // Predicated region
    $region22: #{actor_forward.1} parent=1 // pred_check
      _
    $region23: #{actor_forward.1} parent=1 // pred_check_branch
      %76 = sbr.rel (0) target = $region25
    $region24: #{actor_forward.1} parent=1 // pred_region
      %78 = vsyncadd [#allocation11], 0
      %s79 = sshll.u32 %s5, 4
      %s80 = int_to_ptr.hbm [resolvable:$true] %s79
      %s81 = sshll.u32 [#allocation10], 4
      %s82 = int_to_ptr.vmem [resolvable:$true] %s81
      %87 = dma.hbm_to_vmem [thread:$0]  %s80, 1024, %s82, [#allocation11], 64, 64, 4
    $region25: #{actor_forward.1} parent=1 // pred_fallthru
      _
    // Predicated region
    $region26: #{actor_forward.1} parent=1 // pred_check
      _
    $region27: #{actor_forward.1} parent=1 // pred_check_branch
      %89 = sbr.rel (0) target = $region29
    $region28: #{actor_forward.1} parent=1 // pred_region
      %91 = vsyncadd [#allocation11], 0
      %s93 = sshll.u32 %s6, 4
      %s94 = int_to_ptr.hbm [resolvable:$true] %s93
      %s95 = sshll.u32 [#allocation12], 4
      %s96 = int_to_ptr.vmem [resolvable:$true] %s95
      %98 = dma.hbm_to_vmem [thread:$0]  %s94, 128, %s96, [#allocation11]
    $region29: #{actor_forward.1} parent=1 // pred_fallthru
      _
    // Predicated region
    $region30: #{actor_forward.1} parent=1 // pred_check
      _
    $region31: #{actor_forward.1} parent=1 // pred_check_branch
      %100 = sbr.rel (0) target = $region33
    $region32: #{actor_forward.1} parent=1 // pred_region
      %102 = dma.done [#allocation3], 128
    $region33: #{actor_forward.1} parent=1 // pred_fallthru
      _
    // Predicated region
    $region34: #{actor_forward.1} parent=1 // pred_check
      _
    $region35: #{actor_forward.1} parent=1 // pred_check_branch
      %104 = sbr.rel (0) target = $region37
    $region36: #{actor_forward.1} parent=1 // pred_region
      %106 = dma.done [#allocation5], 128
    $region37: #{actor_forward.1} parent=1 // pred_fallthru
      _
    // Predicated region
    $region38: #{actor_forward.1} parent=1 // pred_check
      _
    $region39: #{actor_forward.1} parent=1 // pred_check_branch
      %108 = sbr.rel (0) target = $region41
    $region40: #{actor_forward.1} parent=1 // pred_region
      %110 = dma.done [#allocation5], 128
    $region41: #{actor_forward.1} parent=1 // pred_fallthru
      _
    // Predicated region
    $region42: #{actor_forward.1} parent=1 // pred_check
      _
    $region43: #{actor_forward.1} parent=1 // pred_check_branch
      %112 = sbr.rel (0) target = $region45
    $region44: #{actor_forward.1} parent=1 // pred_region
      %114 = dma.done [#allocation8], 1024
    $region45: #{actor_forward.1} parent=1 // pred_fallthru
      _
    // Predicated region
    $region46: #{actor_forward.1} parent=1 // pred_check
      _
    $region47: #{actor_forward.1} parent=1 // pred_check_branch
      %116 = sbr.rel (0) target = $region49
    $region48: #{actor_forward.1} parent=1 // pred_region
      %118 = dma.done [#allocation8], 128
    $region49: #{actor_forward.1} parent=1 // pred_fallthru
      _
    // Predicated region
    $region50: #{actor_forward.1} parent=1 // pred_check
      _
    $region51: #{actor_forward.1} parent=1 // pred_check_branch
      %120 = sbr.rel (0) target = $region53
    $region52: #{actor_forward.1} parent=1 // pred_region
      %122 = dma.done [#allocation11], 1024
    $region53: #{actor_forward.1} parent=1 // pred_fallthru
      _
    // Predicated region
    $region54: #{actor_forward.1} parent=1 // pred_check
      _
    $region55: #{actor_forward.1} parent=1 // pred_check_branch
      %124 = sbr.rel (0) target = $region57
    $region56: #{actor_forward.1} parent=1 // pred_region
      %126 = dma.done [#allocation11], 128
    $region57: #{actor_forward.1} parent=1 // pred_fallthru
      _
    %v128 = vld [vmem:[#allocation2] sm:$0xff]
    %v129 = vld [vmem:[#allocation6] sm:$0xff]
    %v130 = vld [vmem:[#allocation9] sm:$0xff]
    %v131 = vpack.c.bf16 %v128, %v128
    %v132 = vld [vmem:[#allocation4] sm:$0xf]
    %v133 = vld [vmem:[#allocation4 + $0x4] sm:$0xf]
    %v134 = vperm.slane %v129, 0
    %v137 = vunpack.c.l.b16 %v132
    %v138 = vunpack.c.l.b16 %v133
    %v139 = vpack.c.b16 %v138, %v137
    %vm141 = vcmask 130048
    %v143 = vsel %vm141, %v131, 0
    %145 = vmatpush.bf16.msra.mxu0 0
    %146 = vmatpush.bf16.msra.mxu0 0
    %147 = vmatpush.bf16.msra.mxu0 0
    %148 = vmatpush.bf16.msra.mxu0 0
    %149 = vmatpush.bf16.msra.mxu0 0
    %150 = vmatpush.bf16.msra.mxu0 0
    %151 = vmatpush.bf16.msra.mxu0 0
    %152 = vmatpush.bf16.msra.mxu0 %v139
    %153 = vmatmul.bf16.gmra.mxu0 %v143
    %v154 = vpop.f32.mrf.mxu0
    %v155 = vadd.f32 %v134, %v154
    %v156 = vpop.f32.mrf.mxu0
    %157 = vdwg.mxu0
    %158 = vadd.xlane.f32.xlu0 %v155
    %v159 = vpop.xlane.xlu0 %158
    %v160 = vmul.f32 %v155, %v155
    %161 = vadd.xlane.f32.xlu0 %v160
    %v162 = vpop.xlane.xlu0 %161
    %v163 = vmul.f32 %v159, 0.03125
    %v164 = vmul.f32 %v162, 0.03125
    %v165 = vmul.f32 %v163, %v163
    %v166 = vsub.f32 %v164, %v165
    %v167 = vadd.f32 %v166, 1e-05
    %v168 = vrsqrt.pop %v167
    %v169 = vmul.f32 %v168, %v167
    %v170 = vmul.f32 %v169, %v168
    %v171 = vmul.f32 0.5, %v170
    %v172 = vsub.f32 1.5, %v171
    %v173 = vmul.f32 %v168, %v172
    %vm174 = vweird.f32 %v167
    %vm175 = vweird.f32 %v168
    %vm176 = vmor %vm174, %vm175
    %v177 = vsel %vm176, %v168, %v173
    %v178 = vperm.slane %v129, 1
    %v179 = vmul.f32 %v178, %v177
    %v180 = vmul.f32 %v163, %v179
    %v181 = vperm.slane %v129, 2
    %v182 = vsub.f32 %v181, %v180
    %v183 = vmul.f32 %v155, %v179
    %v184 = vadd.f32 %v183, %v182
    %v185 = vmax.f32 %v184, 0.0
    %v186 = vpack.c.bf16 %v185, %v185
    %v187 = vld [vmem:[#allocation7] sm:$0xf]
    %v188 = vld [vmem:[#allocation7 + $0x4] sm:$0xf]
    %v189 = vld [vmem:[#allocation7 + $0x8] sm:$0xf]
    %v190 = vld [vmem:[#allocation7 + $0xc] sm:$0xf]
    %v191 = vld [vmem:[#allocation7 + $0x10] sm:$0xf]
    %v192 = vld [vmem:[#allocation7 + $0x14] sm:$0xf]
    %v193 = vld [vmem:[#allocation7 + $0x18] sm:$0xf]
    %v194 = vld [vmem:[#allocation7 + $0x1c] sm:$0xf]
    %v195 = vld [vmem:[#allocation7 + $0x20] sm:$0xf]
    %v196 = vld [vmem:[#allocation7 + $0x24] sm:$0xf]
    %v197 = vld [vmem:[#allocation7 + $0x28] sm:$0xf]
    %v198 = vld [vmem:[#allocation7 + $0x2c] sm:$0xf]
    %v199 = vld [vmem:[#allocation7 + $0x30] sm:$0xf]
    %v200 = vld [vmem:[#allocation7 + $0x34] sm:$0xf]
    %v201 = vld [vmem:[#allocation7 + $0x38] sm:$0xf]
    %v202 = vld [vmem:[#allocation7 + $0x3c] sm:$0xf]
    %v203 = vperm.slane %v130, 0
    %v220 = vunpack.c.l.b16 %v187
    %v221 = vunpack.c.l.b16 %v188
    %v222 = vunpack.c.l.b16 %v189
    %v223 = vunpack.c.l.b16 %v190
    %v224 = vunpack.c.l.b16 %v191
    %v225 = vunpack.c.l.b16 %v192
    %v226 = vunpack.c.l.b16 %v193
    %v227 = vunpack.c.l.b16 %v194
    %v228 = vunpack.c.l.b16 %v195
    %v229 = vunpack.c.l.b16 %v196
    %v230 = vunpack.c.l.b16 %v197
    %v231 = vunpack.c.l.b16 %v198
    %v232 = vunpack.c.l.b16 %v199
    %v233 = vunpack.c.l.b16 %v200
    %v234 = vunpack.c.l.b16 %v201
    %v235 = vunpack.c.l.b16 %v202
    %v236 = vpack.c.b16 %v221, %v220
    %v237 = vpack.c.b16 %v223, %v222
    %v238 = vpack.c.b16 %v225, %v224
    %v239 = vpack.c.b16 %v227, %v226
    %v240 = vpack.c.b16 %v229, %v228
    %v241 = vpack.c.b16 %v231, %v230
    %v242 = vpack.c.b16 %v233, %v232
    %v243 = vpack.c.b16 %v235, %v234
    %252 = vmatpush.bf16.msra.mxu0 %v243
    %253 = vmatpush.bf16.msra.mxu0 %v242
    %254 = vmatpush.bf16.msra.mxu0 %v241
    %255 = vmatpush.bf16.msra.mxu0 %v240
    %256 = vmatpush.bf16.msra.mxu0 %v239
    %257 = vmatpush.bf16.msra.mxu0 %v238
    %258 = vmatpush.bf16.msra.mxu0 %v237
    %259 = vmatpush.bf16.msra.mxu0 %v236
    %260 = vmatmul.bf16.gmra.mxu0 %v186
    %v261 = vpop.f32.mrf.mxu0
    %v262 = vadd.f32 %v203, %v261
    %v263 = vpop.f32.mrf.mxu0
    %264 = vdwg.mxu0
    %265 = vadd.xlane.f32.xlu0 %v262
    %v266 = vpop.xlane.xlu0 %265
    %v267 = vmul.f32 %v262, %v262
    %268 = vadd.xlane.f32.xlu0 %v267
    %v269 = vpop.xlane.xlu0 %268
    %v270 = vmul.f32 %v266, 0.03125
    %v271 = vmul.f32 %v269, 0.03125
    %v272 = vmul.f32 %v270, %v270
    %v273 = vsub.f32 %v271, %v272
    %v274 = vadd.f32 %v273, 1e-05
    %v275 = vrsqrt.pop %v274
    %v276 = vmul.f32 %v275, %v274
    %v277 = vmul.f32 %v276, %v275
    %v278 = vmul.f32 0.5, %v277
    %v279 = vsub.f32 1.5, %v278
    %v280 = vmul.f32 %v275, %v279
    %vm281 = vweird.f32 %v274
    %vm282 = vweird.f32 %v275
    %vm283 = vmor %vm281, %vm282
    %v284 = vsel %vm283, %v275, %v280
    %v285 = vperm.slane %v130, 1
    %v286 = vmul.f32 %v285, %v284
    %v287 = vmul.f32 %v270, %v286
    %v288 = vperm.slane %v130, 2
    %v289 = vsub.f32 %v288, %v287
    %v290 = vmul.f32 %v262, %v286
    %v291 = vadd.f32 %v290, %v289
    %v292 = vmax.f32 %v291, 0.0
    %v293 = vpack.c.bf16 %v292, %v292
    %v294 = vld [vmem:[#allocation10] sm:$0xf]
    %v295 = vld [vmem:[#allocation10 + $0x4] sm:$0xf]
    %v296 = vld [vmem:[#allocation10 + $0x8] sm:$0xf]
    %v297 = vld [vmem:[#allocation10 + $0xc] sm:$0xf]
    %v298 = vld [vmem:[#allocation10 + $0x10] sm:$0xf]
    %v299 = vld [vmem:[#allocation10 + $0x14] sm:$0xf]
    %v300 = vld [vmem:[#allocation10 + $0x18] sm:$0xf]
    %v301 = vld [vmem:[#allocation10 + $0x1c] sm:$0xf]
    %v302 = vld [vmem:[#allocation10 + $0x20] sm:$0xf]
    %v303 = vld [vmem:[#allocation10 + $0x24] sm:$0xf]
    %v304 = vld [vmem:[#allocation10 + $0x28] sm:$0xf]
    %v305 = vld [vmem:[#allocation10 + $0x2c] sm:$0xf]
    %v306 = vld [vmem:[#allocation10 + $0x30] sm:$0xf]
    %v307 = vld [vmem:[#allocation10 + $0x34] sm:$0xf]
    %v308 = vld [vmem:[#allocation10 + $0x38] sm:$0xf]
    %v309 = vld [vmem:[#allocation10 + $0x3c] sm:$0xf]
    %v310 = vld [vmem:[#allocation12] sm:$0x1]
    %v311 = vperm.slane %v310, 0
    %v328 = vunpack.c.l.b16 %v294
    %v329 = vunpack.c.l.b16 %v295
    %v330 = vunpack.c.l.b16 %v296
    %v331 = vunpack.c.l.b16 %v297
    %v332 = vunpack.c.l.b16 %v298
    %v333 = vunpack.c.l.b16 %v299
    %v334 = vunpack.c.l.b16 %v300
    %v335 = vunpack.c.l.b16 %v301
    %v336 = vunpack.c.l.b16 %v302
    %v337 = vunpack.c.l.b16 %v303
    %v338 = vunpack.c.l.b16 %v304
    %v339 = vunpack.c.l.b16 %v305
    %v340 = vunpack.c.l.b16 %v306
    %v341 = vunpack.c.l.b16 %v307
    %v342 = vunpack.c.l.b16 %v308
    %v343 = vunpack.c.l.b16 %v309
    %v344 = vpack.c.b16 %v329, %v328
    %v345 = vpack.c.b16 %v331, %v330
    %v346 = vpack.c.b16 %v333, %v332
    %v347 = vpack.c.b16 %v335, %v334
    %v348 = vpack.c.b16 %v337, %v336
    %v349 = vpack.c.b16 %v339, %v338
    %v350 = vpack.c.b16 %v341, %v340
    %v351 = vpack.c.b16 %v343, %v342
    %360 = vmatpush.bf16.msra.mxu0 %v351
    %361 = vmatpush.bf16.msra.mxu0 %v350
    %362 = vmatpush.bf16.msra.mxu0 %v349
    %363 = vmatpush.bf16.msra.mxu0 %v348
    %364 = vmatpush.bf16.msra.mxu0 %v347
    %365 = vmatpush.bf16.msra.mxu0 %v346
    %366 = vmatpush.bf16.msra.mxu0 %v345
    %367 = vmatpush.bf16.msra.mxu0 %v344
    %368 = vmatmul.bf16.gmra.mxu0 %v293
    %v369 = vpop.f32.mrf.mxu0
    %v370 = vadd.f32 %v311, %v369
    %v371 = vpop.f32.mrf.mxu0
    %372 = vdwg.mxu0
    %v373 = vtanh.pop %v370
    %374 = vst [vmem:[%s7] sm:$0xff] %v373
    // Predicated region
    $region58: #{actor_forward.1} parent=1 // pred_check
      _
    $region59: #{actor_forward.1} parent=1 // pred_check_branch
      %376 = sbr.rel (0) target = $region61
    $region60: #{actor_forward.1} parent=1 // pred_region
      _
    $region61: #{actor_forward.1} parent=1 // pred_fallthru
      _
    // Predicated region
    $region62: #{actor_forward.1} parent=1 // pred_check
      _
    $region63: #{actor_forward.1} parent=1 // pred_check_branch
      %378 = sbr.rel (0) target = $region65
    $region64: #{actor_forward.1} parent=1 // pred_region
      _
    $region65: #{actor_forward.1} parent=1 // pred_fallthru
      _
    %379 = vsyncpa [#allocation3], 1
    %380 = vsyncpa [#allocation5], 1
    %381 = vsyncpa [#allocation8], 1
    %382 = vsyncpa [#allocation11], 1

</llo_original>
